<compile_context>
chip_gen: v6e
topology: v6e:2x2x1
jax: 0.10.0
libtpu: 0.0.40
codegen_flags: <defaults>
</compile_context>

<pallas_src>
import functools

import jax
import jax.numpy as jnp
from jax import lax
from jax.experimental import pallas as pl
from jax.experimental.pallas import tpu as pltpu


def _cdiv(a, b):
    return -(-a // b)


def _round_up(a, b):
    return (a + b - 1) // b * b


def _round_down(a, b):
    return a // b * b


def _vmem_limit_bytes():
    """Generation-aware scoped VMEM limit: half of physical, clamped to [32, 64] MiB."""
    try:
        cap = int(pltpu.get_tpu_info().vmem_capacity_bytes)
    except Exception:  # pragma: no cover - conservative fallback
        cap = 64 * 1024 * 1024
    return max(32 * 1024 * 1024, min(cap // 2, 64 * 1024 * 1024))


# --------------------------------------------------------------------------- #
# Pass 1 (training): per-shard column sum / sum-of-squares accumulation
# --------------------------------------------------------------------------- #
def _stats_kernel(x_ref, part_ref, *, tile_rows, tiles_per_shard, n_valid):
    c = pl.program_id(0)                      # shard (parallel across TCs)
    i = pl.program_id(1)                      # row tile within the shard
    row_start = (c * tiles_per_shard + i) * tile_rows

    @pl.when(i == 0)
    def _init():
        part_ref[...] = jnp.zeros_like(part_ref)

    @pl.when(row_start < n_valid)
    def _process():
        xf = x_ref[...].astype(jnp.float32)                     # (tile_rows, Dp)

        def _accum(v):
            s = jnp.sum(v, axis=0, keepdims=True)               # (1, Dp)
            q = jnp.sum(v * v, axis=0, keepdims=True)           # (1, Dp)
            part_ref[...] = part_ref[...] + jnp.concatenate([s, q], axis=0)[None]

        is_partial = row_start + tile_rows > n_valid

        @pl.when(jnp.logical_not(is_partial))                   # common, unmasked path
        def _():
            _accum(xf)

        @pl.when(is_partial)                                    # only the ragged tile
        def _():
            rows = lax.broadcasted_iota(jnp.int32, xf.shape, 0) + row_start
            _accum(jnp.where(rows < n_valid, xf, 0.0))


# --------------------------------------------------------------------------- #
# Pass 2: normalize (lane-dense, multiply by precomputed reciprocal std)
# --------------------------------------------------------------------------- #
def _normalize_kernel(params_ref, x_ref, y_ref):
    mean = params_ref[0:1, :]                                   # (1, Dp)
    inv_std = params_ref[1:2, :]
    y_ref[...] = ((x_ref[...].astype(jnp.float32) - mean) * inv_std).astype(y_ref.dtype)


# --------------------------------------------------------------------------- #
# Wrapper
# --------------------------------------------------------------------------- #
def normalize_ewma_forward(x, running_mean, running_mean_sq, debiasing_term, *,
                           beta=0.99999, epsilon=1e-5, per_element_update=False,
                           training=True, block_rows=None, out_dtype=jnp.float32):
    """NormalizeEwma.forward (norm_axes=2).

    x: (B, T, D), any float dtype (cast to f32 in-kernel).
    running_mean / running_mean_sq: (D,) f32; debiasing_term: scalar f32.
    Returns (y, new_running_mean, new_running_mean_sq, new_debiasing_term).
    """
    B, T, D = x.shape
    N = B * T
    x_dtype = x.dtype

    # ---- lane packing: make the last dim 128-lane dense whenever D divides 128
    pack = 128 // D if (D < 128 and 128 % D == 0) else 1
    Dp = D * pack
    Np = _cdiv(N, pack)                       # packed rows covering all data
    N_pad = Np * pack

    x_flat = x.reshape(N, D)
    if N_pad != N:
        # zero-pad the ragged tail (zeros contribute nothing to the sums)
        x_flat = jnp.pad(x_flat, ((0, N_pad - N), (0, 0)))
    x2 = x_flat.reshape(Np, Dp)

    # ---- row-tile sizing from the VMEM budget (pass-2 double-buffered in+out)
    vmem_limit = _vmem_limit_bytes()
    x_isz = jnp.dtype(x_dtype).itemsize
    o_isz = jnp.dtype(out_dtype).itemsize
    sub = 8 * max(1, 4 // max(x_isz, 1))      # sublane granularity: f32 8, bf16 16, 8-bit 32
    budget = (vmem_limit * 3) // 4            # headroom under the scoped limit
    max_rows = max(budget // (2 * Dp * (x_isz + o_isz)), sub)
    tile_rows = max_rows if block_rows is None else min(int(block_rows), max_rows)
    tile_rows = min(tile_rows, _round_up(Np, sub), 32768)
    tile_rows = max(_round_down(tile_rows, sub), sub)

    num_tiles = _cdiv(Np, tile_rows)

    rm = running_mean.astype(jnp.float32).reshape(D)
    rmsq = running_mean_sq.astype(jnp.float32).reshape(D)
    dt = jnp.asarray(debiasing_term, jnp.float32).reshape(())

    if training:
        num_shards = 2 if num_tiles >= 2 else 1     # both TCs on v7x; harmless elsewhere
        tiles_per_shard = _cdiv(num_tiles, num_shards)
        last_block = num_tiles - 1

        partials = pl.pallas_call(
            functools.partial(_stats_kernel, tile_rows=tile_rows,
                              tiles_per_shard=tiles_per_shard, n_valid=Np),
            grid=(num_shards, tiles_per_shard),
            in_specs=[pl.BlockSpec(
                (tile_rows, Dp),
                lambda c, i: (jnp.minimum(c * tiles_per_shard + i, last_block), 0))],
            out_specs=pl.BlockSpec((1, 2, Dp), lambda c, i: (c, 0, 0)),
            out_shape=jax.ShapeDtypeStruct((num_shards, 2, Dp), jnp.float32),
            compiler_params=pltpu.CompilerParams(
                dimension_semantics=("parallel", "arbitrary"),
                vmem_limit_bytes=vmem_limit),
        )(x2)

        # Tiny O(D) finalize: combine shards, fold lane-pack groups, EWMA update.
        sums = jnp.sum(partials, axis=0)                              # (2, Dp)
        if pack > 1:
            sums = jnp.sum(sums.reshape(2, pack, D), axis=1)          # (2, D)
        batch_mean = sums[0] / jnp.float32(N)
        batch_sq_mean = sums[1] / jnp.float32(N)

        w = float(beta) ** N if per_element_update else float(beta)
        new_rm = rm * w + batch_mean * (1.0 - w)
        new_rmsq = rmsq * w + batch_sq_mean * (1.0 - w)
        new_dt = dt * w + (1.0 - w)
    else:
        new_rm, new_rmsq, new_dt = rm, rmsq, dt

    # running_mean_var(): debias, clamp, precompute 1/std (tiny O(D) JAX ops).
    dt_c = jnp.maximum(new_dt, jnp.float32(epsilon))
    mean = new_rm / dt_c
    mean_sq = new_rmsq / dt_c
    var = jnp.maximum(mean_sq - mean * mean, jnp.float32(0.01))
    inv_std = 1.0 / jnp.sqrt(var)
    params = jnp.stack([mean, inv_std])                               # (2, D)
    params_p = jnp.tile(params, (1, pack)) if pack > 1 else params    # (2, Dp)

    y2 = pl.pallas_call(
        _normalize_kernel,
        grid=(num_tiles,),
        in_specs=[pl.BlockSpec((2, Dp), lambda i: (0, 0)),
                  pl.BlockSpec((tile_rows, Dp), lambda i: (i, 0))],
        out_specs=pl.BlockSpec((tile_rows, Dp), lambda i: (i, 0)),
        out_shape=jax.ShapeDtypeStruct((Np, Dp), out_dtype),
        compiler_params=pltpu.CompilerParams(
            dimension_semantics=("parallel",),
            vmem_limit_bytes=vmem_limit),
    )(params_p, x2)

    y = y2.reshape(N_pad, D)[:N].reshape(B, T, D)
    return y, new_rm, new_rmsq, new_dt


# --------------------------------------------------------------------------- #
# Pure-JAX reference (mirrors the PyTorch module)
# --------------------------------------------------------------------------- #
def _reference_forward(x, rm, rmsq, dt, *, beta=0.99999, epsilon=1e-5,
                       per_element_update=False, training=True):
    x = x.astype(jnp.float32)
    if training:
        batch_mean = x.mean(axis=(0, 1))
        batch_sq_mean = (x * x).mean(axis=(0, 1))
        w = float(beta) ** (x.shape[0] * x.shape[1]) if per_element_update else float(beta)
        rm = rm * w + batch_mean * (1.0 - w)
        rmsq = rmsq * w + batch_sq_mean * (1.0 - w)
        dt = dt * w + 1.0 * (1.0 - w)
    dt_c = jnp.maximum(dt, epsilon)
    mean = rm / dt_c
    mean_sq = rmsq / dt_c
    var = jnp.maximum(mean_sq - mean * mean, 0.01)
    y = (x - mean[None, None, :]) / jnp.sqrt(var)[None, None, :]
    return y, rm, rmsq, jnp.asarray(dt, jnp.float32).reshape(())


if __name__ == "__main__":
    # Module config: input_shape=(32,), norm_axes=2 -> x is (B, T, 32)
    B, T, D = 2, 8, 32
    key = jax.random.PRNGKey(0)
    x = jax.random.normal(key, (B, T, D), dtype=jnp.float32) * 3.0 + 1.5

    rm0 = jnp.zeros((D,), jnp.float32)
    rmsq0 = jnp.zeros((D,), jnp.float32)
    dt0 = jnp.float32(0.0)

    # ---- training mode, f32 input ----
    y, nrm, nrmsq, ndt = normalize_ewma_forward(x, rm0, rmsq0, dt0, training=True)
    jax.block_until_ready((y, nrm, nrmsq, ndt))
    yr, rmr, rmsqr, dtr = _reference_forward(x, rm0, rmsq0, dt0, training=True)
    assert jnp.allclose(y, yr, atol=1e-5, rtol=1e-5)
    assert jnp.allclose(nrm, rmr, atol=1e-6, rtol=1e-5)
    assert jnp.allclose(nrmsq, rmsqr, atol=1e-6, rtol=1e-5)
    assert jnp.allclose(ndt, dtr, atol=1e-7, rtol=1e-6)

    # ---- eval mode, using the updated running statistics ----
    y_e, _, _, _ = normalize_ewma_forward(x, nrm, nrmsq, ndt, training=False)
    y_er, _, _, _ = _reference_forward(x, rmr, rmsqr, dtr, training=False)
    assert jnp.allclose(y_e, y_er, atol=1e-5, rtol=1e-5)

    # ---- training mode, bf16 input (native-dtype HBM reads), per-element update ----
    xb = x.astype(jnp.bfloat16)
    y_b, nrm_b, nrmsq_b, ndt_b = normalize_ewma_forward(
        xb, rm0, rmsq0, dt0, training=True, per_element_update=True)
    y_br, rm_br, rmsq_br, dt_br = _reference_forward(
        xb, rm0, rmsq0, dt0, training=True, per_element_update=True)
    assert jnp.allclose(y_b, y_br, atol=1e-4, rtol=1e-4)
    assert jnp.allclose(nrm_b, rm_br, atol=1e-5, rtol=1e-4)
    assert jnp.allclose(nrmsq_b, rmsq_br, atol=1e-5, rtol=1e-4)
    assert jnp.allclose(ndt_b, dt_br, atol=1e-7, rtol=1e-5)

    # ---- ragged N (not a multiple of the lane-pack factor) + multi-tile +
    #      2-shard reduction + gated last-tile mask (block_rows=8 forces 4 tiles) ----
    B2, T2 = 2, 61
    x3 = jax.random.normal(jax.random.PRNGKey(1), (B2, T2, D), jnp.float32) * 2.0 - 0.7
    y3, rm3, rmsq3, dt3 = normalize_ewma_forward(
        x3, rm0, rmsq0, dt0, training=True, block_rows=8)
    y3r, rm3r, rmsq3r, dt3r = _reference_forward(x3, rm0, rmsq0, dt0, training=True)
    assert jnp.allclose(y3, y3r, atol=1e-5, rtol=1e-5)
    assert jnp.allclose(rm3, rm3r, atol=1e-6, rtol=1e-5)
    assert jnp.allclose(rmsq3, rmsq3r, atol=1e-6, rtol=1e-5)
    assert jnp.allclose(dt3, dt3r, atol=1e-7, rtol=1e-6)

    # ---- optional native-dtype output (halves pass-2 write traffic for bf16) ----
    y_nb, _, _, _ = normalize_ewma_forward(
        xb, rm0, rmsq0, dt0, training=True, per_element_update=True,
        out_dtype=jnp.bfloat16)
    assert y_nb.dtype == jnp.bfloat16
    assert jnp.allclose(y_nb.astype(jnp.float32), y_br, atol=5e-2, rtol=5e-2)

    jax.block_until_ready((y_e, y_b, y3, y_nb))
    print("KERNEL_OK")
</pallas_src>

<mosaic_0001>
module attributes {stable_mosaic.version = 11 : i64} {
  func.func @_stats_kernel(%arg0: i32, %arg1: i32, %arg2: memref<8x128xf32, #tpu.memory_space<vmem>>, %arg3: memref<1x2x128xf32, #tpu.memory_space<vmem>>) attributes {dimension_semantics = [#tpu.dimension_semantics<parallel>, #tpu.dimension_semantics<arbitrary>], iteration_bounds = array<i64: 1, 1>, scalar_prefetch = 0 : i64, scratch_operands = 0 : i64, tpu.core_type = #tpu.core_type<tc>, window_params = [{transform_indices = @transform_0, window_bounds = array<i64: 8, 128>}, {transform_indices = @transform_1, window_bounds = array<i64: 1, 2, 128>}]} {
    %c1_i32 = arith.constant 1 : i32
    %0 = arith.muli %arg0, %c1_i32 : i32
    %1 = arith.addi %0, %arg1 : i32
    %c8_i32 = arith.constant 8 : i32
    %2 = arith.muli %1, %c8_i32 : i32
    %c0_i32 = arith.constant 0 : i32
    %3 = arith.cmpi eq, %arg1, %c0_i32 : i32
    %4 = arith.extui %3 : i1 to i32
    %c0_i32_0 = arith.constant 0 : i32
    %5 = arith.cmpi ne, %4, %c0_i32_0 : i32
    scf.if %5 {
      %cst = arith.constant 0.000000e+00 : f32
      %9 = vector.broadcast %cst : f32 to vector<1x2x128xf32>
      %c0 = arith.constant 0 : index
      %c0_2 = arith.constant 0 : index
      %c0_3 = arith.constant 0 : index
      %10 = vector.load %arg3[%c0, %c0_2, %c0_3] : memref<1x2x128xf32, #tpu.memory_space<vmem>>, vector<1x2x128xf32>
      tpu.vector_store %arg3[%c0, %c0_2, %c0_3], %9 {strides = array<i32>} : memref<1x2x128xf32, #tpu.memory_space<vmem>>, vector<1x2x128xf32>,
    } else {
    }
    %c4_i32 = arith.constant 4 : i32
    %6 = arith.cmpi slt, %2, %c4_i32 : i32
    %7 = arith.extui %6 : i1 to i32
    %c0_i32_1 = arith.constant 0 : i32
    %8 = arith.cmpi ne, %7, %c0_i32_1 : i32
    scf.if %8 {
      %c0 = arith.constant 0 : index
      %c0_2 = arith.constant 0 : index
      %9 = vector.load %arg2[%c0, %c0_2] : memref<8x128xf32, #tpu.memory_space<vmem>>, vector<8x128xf32>
      %c8_i32_3 = arith.constant 8 : i32
      %10 = arith.addi %2, %c8_i32_3 : i32
      %c4_i32_4 = arith.constant 4 : i32
      %11 = arith.cmpi sgt, %10, %c4_i32_4 : i32
      %true = arith.constant true
      %12 = arith.xori %11, %true : i1
      %13 = arith.extui %12 : i1 to i32
      %c0_i32_5 = arith.constant 0 : i32
      %14 = arith.cmpi ne, %13, %c0_i32_5 : i32
      scf.if %14 {
        %cst = arith.constant dense<0.000000e+00> : vector<128xf32>
        %17 = vector.multi_reduction <add>, %9, %cst [0] : vector<8x128xf32> to vector<128xf32>
        %18 = vector.shape_cast %17 : vector<128xf32> to vector<1x128xf32>
        %19 = arith.mulf %9, %9 : vector<8x128xf32>
        %cst_7 = arith.constant dense<0.000000e+00> : vector<128xf32>
        %20 = vector.multi_reduction <add>, %19, %cst_7 [0] : vector<8x128xf32> to vector<128xf32>
        %21 = vector.shape_cast %20 : vector<128xf32> to vector<1x128xf32>
        %c0_8 = arith.constant 0 : index
        %c0_9 = arith.constant 0 : index
        %c0_10 = arith.constant 0 : index
        %22 = vector.load %arg3[%c0_8, %c0_9, %c0_10] : memref<1x2x128xf32, #tpu.memory_space<vmem>>, vector<1x2x128xf32>
        %23 = tpu.concatenate %18, %21 in 0 : vector<1x128xf32>, vector<1x128xf32> -> vector<2x128xf32>
        %24 = vector.shape_cast %23 : vector<2x128xf32> to vector<1x2x128xf32>
        %25 = arith.addf %22, %24 : vector<1x2x128xf32>
        %c0_11 = arith.constant 0 : index
        %c0_12 = arith.constant 0 : index
        %c0_13 = arith.constant 0 : index
        %26 = vector.load %arg3[%c0_11, %c0_12, %c0_13] : memref<1x2x128xf32, #tpu.memory_space<vmem>>, vector<1x2x128xf32>
        tpu.vector_store %arg3[%c0_11, %c0_12, %c0_13], %25 {strides = array<i32>} : memref<1x2x128xf32, #tpu.memory_space<vmem>>, vector<1x2x128xf32>,
      } else {
      }
      %15 = arith.extui %11 : i1 to i32
      %c0_i32_6 = arith.constant 0 : i32
      %16 = arith.cmpi ne, %15, %c0_i32_6 : i32
      scf.if %16 {
        %17 = tpu.iota {dimensions = array<i32: 0>} : vector<8x128xi32>
        %18 = vector.broadcast %2 : i32 to vector<8x128xi32>
        %19 = arith.addi %17, %18 : vector<8x128xi32>
        %c4_i32_7 = arith.constant 4 : i32
        %20 = vector.broadcast %c4_i32_7 : i32 to vector<8x128xi32>
        %21 = arith.cmpi slt, %19, %20 : vector<8x128xi32>
        %cst = arith.constant 0.000000e+00 : f32
        %22 = vector.broadcast %cst : f32 to vector<8x128xf32>
        %23 = arith.select %21, %9, %22 : vector<8x128xi1>, vector<8x128xf32>
        %cst_8 = arith.constant dense<0.000000e+00> : vector<128xf32>
        %24 = vector.multi_reduction <add>, %23, %cst_8 [0] : vector<8x128xf32> to vector<128xf32>
        %25 = vector.shape_cast %24 : vector<128xf32> to vector<1x128xf32>
        %26 = arith.mulf %23, %23 : vector<8x128xf32>
        %cst_9 = arith.constant dense<0.000000e+00> : vector<128xf32>
        %27 = vector.multi_reduction <add>, %26, %cst_9 [0] : vector<8x128xf32> to vector<128xf32>
        %28 = vector.shape_cast %27 : vector<128xf32> to vector<1x128xf32>
        %c0_10 = arith.constant 0 : index
        %c0_11 = arith.constant 0 : index
        %c0_12 = arith.constant 0 : index
        %29 = vector.load %arg3[%c0_10, %c0_11, %c0_12] : memref<1x2x128xf32, #tpu.memory_space<vmem>>, vector<1x2x128xf32>
        %30 = tpu.concatenate %25, %28 in 0 : vector<1x128xf32>, vector<1x128xf32> -> vector<2x128xf32>
        %31 = vector.shape_cast %30 : vector<2x128xf32> to vector<1x2x128xf32>
        %32 = arith.addf %29, %31 : vector<1x2x128xf32>
        %c0_13 = arith.constant 0 : index
        %c0_14 = arith.constant 0 : index
        %c0_15 = arith.constant 0 : index
        %33 = vector.load %arg3[%c0_13, %c0_14, %c0_15] : memref<1x2x128xf32, #tpu.memory_space<vmem>>, vector<1x2x128xf32>
        tpu.vector_store %arg3[%c0_13, %c0_14, %c0_15], %32 {strides = array<i32>} : memref<1x2x128xf32, #tpu.memory_space<vmem>>, vector<1x2x128xf32>,
      } else {
      }
    } else {
    }
    return
  }
  func.func @transform_0(%arg0: i32, %arg1: i32) -> (i32, i32) {
    %c1_i32 = arith.constant 1 : i32
    %0 = arith.muli %arg0, %c1_i32 : i32
    %1 = arith.addi %0, %arg1 : i32
    %c0_i32 = arith.constant 0 : i32
    %2 = arith.minsi %1, %c0_i32 : i32
    %c0_i32_0 = arith.constant 0 : i32
    %c0_i32_1 = arith.constant 0 : i32
    return %2, %c0_i32_0 : i32, i32
  }
  func.func @transform_1(%arg0: i32, %arg1: i32) -> (i32, i32, i32) {
    %c0_i32 = arith.constant 0 : i32
    %c0_i32_0 = arith.constant 0 : i32
    %c0_i32_1 = arith.constant 0 : i32
    return %arg0, %c0_i32, %c0_i32_0 : i32, i32, i32
  }
}

</mosaic_0001>

<llo_original>
// kernel: tpu_custom_call.1
$region0: #{tpu_custom_call.1}
  #allocation0 [shape = 'u32[]', space=smem, size = 0x4, offset = 0x4, fixed_abs, tag = 'smem constant byte address 0x4 - core index']
  #allocation1 [shape = 'u32[144,128]{1,0:T(1,128)}', space=vmem, size = 0x12000, scoped, tag = 'internal scratch']
  %s0 = inlined_call_operand.hbm [shape: f32[4,128], index: 0, kind: input, shape index: {}]
  %s1 = inlined_call_operand.hbm [shape: f32[1,2,128], index: 1, kind: output, shape index: {}]
  %s2 = sld [smem:[#allocation0]]
  $region34: #{tpu_custom_call.1} parent=0
    _
  %s4 = ssub.s32 1, %s2
  %s5 = scalar_select 0, %s4, %s2
  $region1: #{tpu_custom_call.1} parent=0
    #allocation2 [shape = 'u8[4096]{0}', space=vmem, size = 0x1000, scoped, tag = 'input window, operand 0, single buffered']
    #allocation3 [shape = 's32[1]{0}', space=sflag, size = 0x4, scoped, tag = 'scoped memory for tpu_custom_call.1']
    #allocation4 [shape = 's32[1]{0}', space=sflag, size = 0x4, scoped, tag = 'scoped memory for tpu_custom_call.1']
    #allocation5 [shape = 'u8[1024]{0}', space=vmem, size = 0x400, scoped, tag = 'output window, operand 0, single buffered']
    %6 = vsyncpa [#allocation3], 0
    %7 = vsyncpa [#allocation4], 0
    // Predicated region
    $region2: #{tpu_custom_call.1} parent=1 // pred_check
      _
    $region3: #{tpu_custom_call.1} parent=1 // pred_check_branch
      %9 = sbr.rel (0) target = $region5
    $region4: #{tpu_custom_call.1} parent=1 // pred_region
      %s10 = sadd.s32 0, 0
      %p11 = scmp.lt.s32.totalorder %s10, 0
      %s12 = scalar_select %p11, %s10, 0
      %s13 = smul.u32 2, %s12
      %s14 = ssub.s32 1, %s13
      %s15 = smul.u32 64, %s14
      %s17 = ssub.s32 128, %s15
      %18 = vsyncadd [#allocation3], %s17
      %p19 = scmp.ne.s32.totalorder 0, %s15
      %s20 = smul.addr %s13, 64
      %s21 = scalar_lea.hbm %s0, %s20
      %s22 = smul.u32 4, %s14
      %s23 = sshll.u32 [#allocation2], 4
      %s24 = int_to_ptr.vmem [resolvable:$true] %s23
      %s25 = sshll.u32 %s22, 4
      %29 = dma.hbm_to_vmem [thread:$0]  (%p19), %s21, %s25, %s24, [#allocation3], 64, 64, 4
    $region5: #{tpu_custom_call.1} parent=1 // pred_fallthru
      _
    // Predicated region
    $region6: #{tpu_custom_call.1} parent=1 // pred_check
      _
    $region7: #{tpu_custom_call.1} parent=1 // pred_check_branch
      %31 = sbr.rel (0) target = $region9
    $region8: #{tpu_custom_call.1} parent=1 // pred_region
      %32 = dma.done [#allocation3], 128
    $region9: #{tpu_custom_call.1} parent=1 // pred_fallthru
      _
    %s33 = sadd.s32 0, 0
    %p34 = scmp.lt.s32.totalorder %s33, 0
    %s35 = scalar_select %p34, %s33, 0
    %s36 = smul.u32 2, %s35
    %s37 = ssub.s32 1, %s36
    %s38 = smul.u32 64, %s37
    %s39 = sadd.s32 0, 0
    %s40 = smul.u32 %s39, 8
    %p41 = scmp.eq.s32.totalorder 0, 0
    // Predicated region
    $region10: #{tpu_custom_call.1} parent=1 // pred_check
      %p42 = pneg %p41
    $region11: #{tpu_custom_call.1} parent=1 // pred_check_branch
      %44 = sbr.rel (%p42) target = $region13
    $region12: #{tpu_custom_call.1} parent=1 // pred_region
      %45 = vst [vmem:[#allocation5] sm:$0x3] 0.0
    $region13: #{tpu_custom_call.1} parent=1 // pred_fallthru
      _
    %p46 = scmp.lt.s32.totalorder %s40, 4
    // Predicated region
    $region14: #{tpu_custom_call.1} parent=1 // pred_check
      %p47 = pneg %p46
    $region15: #{tpu_custom_call.1} parent=1 // pred_check_branch
      %49 = sbr.rel (%p47) target = $region17
    $region16: #{tpu_custom_call.1} parent=1 // pred_region
      %v50 = vld [vmem:[#allocation2] sm:$0xff]
      %s51 = sadd.s32 %s40, 8
      %p52 = scmp.gt.s32.totalorder %s51, 4
      %p53 = scmp.le.s32.totalorder %s51, 4
      // Predicated region
      $region18: #{tpu_custom_call.1} parent=16 // pred_check
        %p54 = pneg %p53
      $region19: #{tpu_custom_call.1} parent=16 // pred_check_branch
        %56 = sbr.rel (%p54) target = $region21
      $region20: #{tpu_custom_call.1} parent=16 // pred_region
        %v57 = vrot.slane %v50, 4
        %v58 = vadd.f32 %v50, %v57
        %v59 = vrot.slane %v58, 2
        %v60 = vadd.f32 %v58, %v59
        %v61 = vrot.slane %v60, 1
        %v62 = vadd.f32 %v60, %v61
        %v63 = vmul.f32 %v50, %v50
        %v64 = vrot.slane %v63, 4
        %v65 = vadd.f32 %v63, %v64
        %v66 = vrot.slane %v65, 2
        %v67 = vadd.f32 %v65, %v66
        %v68 = vrot.slane %v67, 1
        %v69 = vadd.f32 %v67, %v68
        %v70 = vld [vmem:[#allocation5] sm:$0x3]
        %vm71 = vcmask 1040384
        %v72 = vsel %vm71, %v62, %v69
        %v73 = vadd.f32 %v70, %v72
        %74 = vst [vmem:[#allocation5] sm:$0x3] %v73
      $region21: #{tpu_custom_call.1} parent=16 // pred_fallthru
        _
      // Predicated region
      $region22: #{tpu_custom_call.1} parent=16 // pred_check
        %p75 = pneg %p52
      $region23: #{tpu_custom_call.1} parent=16 // pred_check_branch
        %77 = sbr.rel (%p75) target = $region25
      $region24: #{tpu_custom_call.1} parent=16 // pred_region
        %v78 = vlaneseq
        %v79 = vshrl.u32 %v78, 7
        %v80 = vstv %s40
        %v81 = vadd.s32 %v79, %v80
        %vm82 = vcmp.lt.s32.totalorder %v81, 4
        %v83 = vsel %vm82, %v50, 0.0
        %v84 = vrot.slane %v83, 4
        %v85 = vadd.f32 %v83, %v84
        %v86 = vrot.slane %v85, 2
        %v87 = vadd.f32 %v85, %v86
        %v88 = vrot.slane %v87, 1
        %v89 = vadd.f32 %v87, %v88
        %v90 = vmul.f32 %v83, %v83
        %v91 = vrot.slane %v90, 4
        %v92 = vadd.f32 %v90, %v91
        %v93 = vrot.slane %v92, 2
        %v94 = vadd.f32 %v92, %v93
        %v95 = vrot.slane %v94, 1
        %v96 = vadd.f32 %v94, %v95
        %v97 = vld [vmem:[#allocation5] sm:$0x3]
        %vm98 = vcmask 1040384
        %v99 = vsel %vm98, %v89, %v96
        %v100 = vadd.f32 %v97, %v99
        %101 = vst [vmem:[#allocation5] sm:$0x3] %v100
      $region25: #{tpu_custom_call.1} parent=16 // pred_fallthru
        _
    $region17: #{tpu_custom_call.1} parent=1 // pred_fallthru
      _
    // Predicated region
    $region26: #{tpu_custom_call.1} parent=1 // pred_check
      _
    $region27: #{tpu_custom_call.1} parent=1 // pred_check_branch
      %103 = sbr.rel (0) target = $region29
    $region28: #{tpu_custom_call.1} parent=1 // pred_region
      %s105 = ssub.s32 32, 32
      %106 = vsyncadd [#allocation4], %s105
      %s108 = sshll.u32 [#allocation5], 4
      %s109 = int_to_ptr.vmem [resolvable:$true] %s108
      %111 = dma.vmem_to_hbm [thread:$0]  %s109, 32, %s1, [#allocation4]
    $region29: #{tpu_custom_call.1} parent=1 // pred_fallthru
      _
    // Predicated region
    $region30: #{tpu_custom_call.1} parent=1 // pred_check
      _
    $region31: #{tpu_custom_call.1} parent=1 // pred_check_branch
      %113 = sbr.rel (0) target = $region33
    $region32: #{tpu_custom_call.1} parent=1 // pred_region
      %114 = dma.done [#allocation4], 32
    $region33: #{tpu_custom_call.1} parent=1 // pred_fallthru
      _
    %115 = vsyncpa [#allocation3], 1
    %116 = vsyncpa [#allocation4], 1

</llo_original>
